<compile_context>
chip_gen: v6e
topology: v6e:2x2x1
jax: 0.10.0
libtpu: 0.0.40
codegen_flags: <defaults>
</compile_context>

<pallas_src>
import jax
import jax.numpy as jnp
from jax.experimental import pallas as pl
from jax.experimental.pallas import tpu as pltpu


def _round_up(x, m):
    return ((x + m - 1) // m) * m


def _make_ffn_kernel(d_true, d_pad, eps=1e-6):
    """Kernel closure capturing the true (unpadded) feature dim."""

    def ffn_kernel(x_ref, w1_ref, b1_ref, w2_ref, b2_ref, gamma_ref, beta_ref,
                   o_ref, acc_ref):
        f_idx = pl.program_id(1)

        @pl.when(f_idx == 0)
        def _():
            acc_ref[...] = jnp.zeros_like(acc_ref)

        # fc1 chunk + bias + ReLU (MXU, f32 accumulation). h stays (TN, TF).
        h = jnp.dot(x_ref[...], w1_ref[...], preferred_element_type=jnp.float32)
        h = jnp.maximum(h + b1_ref[...].astype(jnp.float32), 0.0)

        # fc2 partial product, accumulated in f32 VMEM scratch. Downcast h to
        # the weight dtype so bf16 weights keep the MXU on the fast path.
        acc_ref[...] += jnp.dot(h.astype(w2_ref.dtype), w2_ref[...],
                                preferred_element_type=jnp.float32)

        @pl.when(f_idx == pl.num_programs(1) - 1)
        def _():
            # TODO(synk): dropout(p=0.1) is identity at inference; training-mode
            # RNG masking (pltpu.prng_seed / prng_random_bits) not emitted here.
            y = (acc_ref[...] + b2_ref[...].astype(jnp.float32)
                 + x_ref[...].astype(jnp.float32))          # residual, f32

            if d_pad == d_true:
                mean = jnp.mean(y, axis=-1, keepdims=True)
                centered = y - mean
                var = jnp.mean(centered * centered, axis=-1, keepdims=True)
            else:
                # Lane-padded D: statistics over the true D only.  Padded
                # columns of y are exactly zero (zero-padded x/W2/b2), so the
                # plain sum is already correct; mask the centered values so
                # padding cannot leak into the variance.
                inv_d = jnp.float32(1.0 / d_true)
                mean = jnp.sum(y, axis=-1, keepdims=True) * inv_d
                col = jax.lax.broadcasted_iota(jnp.int32, y.shape, 1)
                centered = jnp.where(col < d_true, y - mean, 0.0)
                var = jnp.sum(centered * centered, axis=-1, keepdims=True) * inv_d

            normed = centered * jax.lax.rsqrt(var + eps)
            o_ref[...] = (normed * gamma_ref[...].astype(jnp.float32)
                          + beta_ref[...].astype(jnp.float32)).astype(o_ref.dtype)

    return ffn_kernel


def position_wise_feed_forward(x, w1, b1, w2, b2, gamma, beta, *,
                               tile_n=None, tile_f=None,
                               compute_dtype=jnp.bfloat16):
    """x: (batch, seq, input_dim). w1: (input_dim, dim_ffn), w2: (dim_ffn, input_dim).

    NOTE: dropout is treated as identity (inference mode); this is not a
    drop-in for training-mode PositionWiseFeedForward.  compute_dtype=bf16
    casts x/W1/W2 for the matmuls (f32 accumulation); pass None for full f32.
    """
    batch, seq, d = x.shape
    f = w1.shape[1]
    n = batch * seq
    out_dtype = x.dtype

    # ---- generation-aware VMEM budget & default tiles ----------------------
    try:
        vmem_cap = pltpu.get_tpu_info().vmem_capacity_bytes
    except Exception:
        vmem_cap = 64 * 1024 * 1024
    vmem_limit = int(vmem_cap * 0.85)          # leave headroom for compiler scratch
    big_vmem = vmem_cap >= 96 * 1024 * 1024    # v5e/v6e: 128 MiB; v7x: 64 MiB
    if tile_n is None:
        tile_n = 1024 if big_vmem else 512
    if tile_f is None:
        tile_f = 1024 if big_vmem else 512

    # ---- compute dtype (bf16 MXU path) --------------------------------------
    if compute_dtype is not None:
        mm_dtype = jnp.dtype(compute_dtype)
        cast = lambda a: a if a.dtype == mm_dtype else a.astype(mm_dtype)
    else:
        cast = lambda a: a

    # ---- lane padding: D -> 128-multiple, F -> multiple of TF ---------------
    d_pad = _round_up(d, 128)
    tf = min(_round_up(tile_f, 128), _round_up(f, 128))
    f_pad = _round_up(f, tf)                   # TF divides F_pad exactly
    num_f = f_pad // tf

    # ---- token tile (multiple of 8, >= 2 grid steps for v7x megacore) -------
    tn = min(_round_up(tile_n, 8), _round_up(n, 8))
    if pl.cdiv(n, tn) < 2 and tn > 8:
        tn = _round_up(pl.cdiv(n, 2), 8)
    num_n = pl.cdiv(n, tn)

    # ---- operand preparation (zero column/row padding, dtype cast) ----------
    x2d = cast(x.reshape(n, d))
    if d_pad != d:
        x2d = jnp.pad(x2d, ((0, 0), (0, d_pad - d)))
    w1p, w2p = cast(w1), cast(w2)
    if d_pad != d or f_pad != f:
        w1p = jnp.pad(w1p, ((0, d_pad - d), (0, f_pad - f)))
        w2p = jnp.pad(w2p, ((0, f_pad - f), (0, d_pad - d)))
    b1p = jnp.pad(b1, ((0, 0), (0, f_pad - f))) if f_pad != f else b1
    b2p = jnp.pad(b2, ((0, 0), (0, d_pad - d))) if d_pad != d else b2
    gp = jnp.pad(gamma, ((0, 0), (0, d_pad - d))) if d_pad != d else gamma
    bp = jnp.pad(beta, ((0, 0), (0, d_pad - d))) if d_pad != d else beta

    # ---- specs ---------------------------------------------------------------
    def spec(shape, index_map, resident=False):
        if resident:
            # Constant block -> single VMEM buffer (no pointless double-buffer).
            return pl.BlockSpec(shape, index_map, pipeline_mode=pl.Buffered(1))
        return pl.BlockSpec(shape, index_map)

    w_resident = (num_f == 1)   # weight chunks are constant only if F fits one chunk
    in_specs = [
        spec((tn, d_pad), lambda i, k: (i, 0)),                 # x (held across F)
        spec((d_pad, tf), lambda i, k: (0, k), w_resident),     # W1 chunk
        spec((1, tf),     lambda i, k: (0, k), w_resident),     # b1 chunk
        spec((tf, d_pad), lambda i, k: (k, 0), w_resident),     # W2 chunk
        spec((1, d_pad),  lambda i, k: (0, 0), True),           # b2 (resident)
        spec((1, d_pad),  lambda i, k: (0, 0), True),           # gamma (resident)
        spec((1, d_pad),  lambda i, k: (0, 0), True),           # beta (resident)
    ]
    out_spec = pl.BlockSpec((tn, d_pad), lambda i, k: (i, 0))

    w_bytes = (w1p.size * w1p.dtype.itemsize + w2p.size * w2p.dtype.itemsize)
    cost = pl.CostEstimate(
        flops=2 * 2 * n * d_pad * f_pad,            # two matmuls
        transcendentals=n,                          # rsqrt per row
        bytes_accessed=(n * d_pad * x2d.dtype.itemsize
                        + n * d_pad * jnp.dtype(out_dtype).itemsize
                        + num_n * w_bytes
                        + (f_pad + 3 * d_pad) * 4),
    )

    out = pl.pallas_call(
        _make_ffn_kernel(d, d_pad),
        out_shape=jax.ShapeDtypeStruct((n, d_pad), out_dtype),
        grid_spec=pltpu.PrefetchScalarGridSpec(
            num_scalar_prefetch=0,
            grid=(num_n, num_f),
            in_specs=in_specs,
            out_specs=out_spec,
            scratch_shapes=[pltpu.VMEM((tn, d_pad), jnp.float32)],
        ),
        compiler_params=pltpu.CompilerParams(
            # token tiles parallel (v7x two-TC sharding); F reduction arbitrary.
            dimension_semantics=("parallel", "arbitrary"),
            vmem_limit_bytes=vmem_limit,
        ),
        cost_estimate=cost,
    )(x2d, w1p, b1p, w2p, b2p, gp, bp)

    return out[:, :d].reshape(batch, seq, d)


def _reference(x, w1, b1, w2, b2, gamma, beta):
    h = jnp.maximum(x @ w1 + b1[0], 0.0)
    y = h @ w2 + b2[0]
    y = y + x
    mean = jnp.mean(y, axis=-1, keepdims=True)
    var = jnp.mean((y - mean) ** 2, axis=-1, keepdims=True)
    return (y - mean) / jnp.sqrt(var + 1e-6) * gamma[0] + beta[0]


if __name__ == "__main__":
    batch, seq, input_dim, dim_ffn = 2, 8, 32, 64

    key = jax.random.PRNGKey(0)
    kx, k1, kb1, k2, kb2 = jax.random.split(key, 5)

    x = jax.random.normal(kx, (batch, seq, input_dim), dtype=jnp.float32)

    # Deterministic parameter init (PyTorch Linear-style uniform bounds).
    bound1 = 1.0 / (input_dim ** 0.5)
    w1 = jax.random.uniform(k1, (input_dim, dim_ffn), jnp.float32, -bound1, bound1)
    b1 = jax.random.uniform(kb1, (1, dim_ffn), jnp.float32, -bound1, bound1)
    bound2 = 1.0 / (dim_ffn ** 0.5)
    w2 = jax.random.uniform(k2, (dim_ffn, input_dim), jnp.float32, -bound2, bound2)
    b2 = jax.random.uniform(kb2, (1, input_dim), jnp.float32, -bound2, bound2)
    gamma = jnp.ones((1, input_dim), jnp.float32)   # LayerNorm weight
    beta = jnp.zeros((1, input_dim), jnp.float32)   # LayerNorm bias

    ref = _reference(x, w1, b1, w2, b2, gamma, beta)

    # Full-precision path: tight check against the f32 reference.
    out_f32 = position_wise_feed_forward(x, w1, b1, w2, b2, gamma, beta,
                                         compute_dtype=None)
    out_f32 = jax.block_until_ready(out_f32)
    assert out_f32.shape == (batch, seq, input_dim)
    assert jnp.allclose(out_f32, ref, atol=1e-5, rtol=1e-5)

    # Default bf16-MXU path (perf config): looser tolerance for the cast.
    out_bf16 = position_wise_feed_forward(x, w1, b1, w2, b2, gamma, beta)
    out_bf16 = jax.block_until_ready(out_bf16)
    assert out_bf16.shape == (batch, seq, input_dim)
    assert jnp.allclose(out_bf16, ref, atol=5e-2, rtol=5e-2)

    print("KERNEL_OK")
</pallas_src>

<mosaic_0001>
module attributes {stable_mosaic.version = 11 : i64} {
  func.func @ffn_kernel(%arg0: i32, %arg1: i32, %arg2: memref<8x128xf32, #tpu.memory_space<vmem>>, %arg3: memref<128x128xf32, #tpu.memory_space<vmem>>, %arg4: memref<1x128xf32, #tpu.memory_space<vmem>>, %arg5: memref<128x128xf32, #tpu.memory_space<vmem>>, %arg6: memref<1x128xf32, #tpu.memory_space<vmem>>, %arg7: memref<1x128xf32, #tpu.memory_space<vmem>>, %arg8: memref<1x128xf32, #tpu.memory_space<vmem>>, %arg9: memref<8x128xf32, #tpu.memory_space<vmem>>, %arg10: memref<8x128xf32, #tpu.memory_space<vmem>>) attributes {dimension_semantics = [#tpu.dimension_semantics<parallel>, #tpu.dimension_semantics<arbitrary>], iteration_bounds = array<i64: 2, 1>, scalar_prefetch = 0 : i64, scratch_operands = 1 : i64, tpu.core_type = #tpu.core_type<tc>, window_params = [{transform_indices = @transform_0, window_bounds = array<i64: 8, 128>}, {pipeline_mode = #tpu.pipeline_mode<synchronous>, transform_indices = @transform_1, window_bounds = array<i64: 128, 128>}, {pipeline_mode = #tpu.pipeline_mode<synchronous>, transform_indices = @transform_2, window_bounds = array<i64: 1, 128>}, {pipeline_mode = #tpu.pipeline_mode<synchronous>, transform_indices = @transform_3, window_bounds = array<i64: 128, 128>}, {pipeline_mode = #tpu.pipeline_mode<synchronous>, transform_indices = @transform_4, window_bounds = array<i64: 1, 128>}, {pipeline_mode = #tpu.pipeline_mode<synchronous>, transform_indices = @transform_5, window_bounds = array<i64: 1, 128>}, {pipeline_mode = #tpu.pipeline_mode<synchronous>, transform_indices = @transform_6, window_bounds = array<i64: 1, 128>}, {transform_indices = @transform_7, window_bounds = array<i64: 8, 128>}]} {
    %c0_i32 = arith.constant 0 : i32
    %0 = arith.cmpi eq, %arg1, %c0_i32 : i32
    %1 = arith.extui %0 : i1 to i32
    %c0_i32_0 = arith.constant 0 : i32
    %2 = arith.cmpi ne, %1, %c0_i32_0 : i32
    scf.if %2 {
      %cst_16 = arith.constant 0.000000e+00 : f32
      %19 = vector.broadcast %cst_16 : f32 to vector<8x128xf32>
      %c0_17 = arith.constant 0 : index
      %c0_18 = arith.constant 0 : index
      %20 = vector.load %arg10[%c0_17, %c0_18] : memref<8x128xf32, #tpu.memory_space<vmem>>, vector<8x128xf32>
      tpu.vector_store %arg10[%c0_17, %c0_18], %19 {strides = array<i32>} : memref<8x128xf32, #tpu.memory_space<vmem>>, vector<8x128xf32>,
    } else {
    }
    %c0 = arith.constant 0 : index
    %c0_1 = arith.constant 0 : index
    %3 = vector.load %arg2[%c0, %c0_1] : memref<8x128xf32, #tpu.memory_space<vmem>>, vector<8x128xf32>
    %c0_2 = arith.constant 0 : index
    %c0_3 = arith.constant 0 : index
    %4 = vector.load %arg3[%c0_2, %c0_3] : memref<128x128xf32, #tpu.memory_space<vmem>>, vector<128x128xf32>
    %cst = arith.constant dense<0.000000e+00> : vector<8x128xf32>
    %5 = tpu.matmul %3, %4, %cst {dimension_numbers = #tpu.dot_dimension_numbers<[1], [0], [0], [1], [0, 0, 1, 1], [], []>} : vector<8x128xf32>, vector<128x128xf32>, vector<8x128xf32> -> vector<8x128xf32>
    %c0_4 = arith.constant 0 : index
    %c0_5 = arith.constant 0 : index
    %6 = vector.load %arg4[%c0_4, %c0_5] : memref<1x128xf32, #tpu.memory_space<vmem>>, vector<1x128xf32>
    %7 = vector.broadcast %6 : vector<1x128xf32> to vector<8x128xf32>
    %8 = arith.addf %5, %7 : vector<8x128xf32>
    %cst_6 = arith.constant 0.000000e+00 : f32
    %9 = vector.broadcast %cst_6 : f32 to vector<8x128xf32>
    %10 = arith.maximumf %8, %9 : vector<8x128xf32>
    %c0_7 = arith.constant 0 : index
    %c0_8 = arith.constant 0 : index
    %11 = vector.load %arg10[%c0_7, %c0_8] : memref<8x128xf32, #tpu.memory_space<vmem>>, vector<8x128xf32>
    %c0_9 = arith.constant 0 : index
    %c0_10 = arith.constant 0 : index
    %12 = vector.load %arg5[%c0_9, %c0_10] : memref<128x128xf32, #tpu.memory_space<vmem>>, vector<128x128xf32>
    %cst_11 = arith.constant dense<0.000000e+00> : vector<8x128xf32>
    %13 = tpu.matmul %10, %12, %cst_11 {dimension_numbers = #tpu.dot_dimension_numbers<[1], [0], [0], [1], [0, 0, 1, 1], [], []>} : vector<8x128xf32>, vector<128x128xf32>, vector<8x128xf32> -> vector<8x128xf32>
    %14 = arith.addf %11, %13 : vector<8x128xf32>
    %c0_12 = arith.constant 0 : index
    %c0_13 = arith.constant 0 : index
    %15 = vector.load %arg10[%c0_12, %c0_13] : memref<8x128xf32, #tpu.memory_space<vmem>>, vector<8x128xf32>
    tpu.vector_store %arg10[%c0_12, %c0_13], %14 {strides = array<i32>} : memref<8x128xf32, #tpu.memory_space<vmem>>, vector<8x128xf32>,
    %c0_i32_14 = arith.constant 0 : i32
    %16 = arith.cmpi eq, %arg1, %c0_i32_14 : i32
    %17 = arith.extui %16 : i1 to i32
    %c0_i32_15 = arith.constant 0 : i32
    %18 = arith.cmpi ne, %17, %c0_i32_15 : i32
    scf.if %18 {
      %c0_16 = arith.constant 0 : index
      %c0_17 = arith.constant 0 : index
      %19 = vector.load %arg10[%c0_16, %c0_17] : memref<8x128xf32, #tpu.memory_space<vmem>>, vector<8x128xf32>
      %c0_18 = arith.constant 0 : index
      %c0_19 = arith.constant 0 : index
      %20 = vector.load %arg6[%c0_18, %c0_19] : memref<1x128xf32, #tpu.memory_space<vmem>>, vector<1x128xf32>
      %21 = vector.broadcast %20 : vector<1x128xf32> to vector<8x128xf32>
      %22 = arith.addf %19, %21 : vector<8x128xf32>
      %c0_20 = arith.constant 0 : index
      %c0_21 = arith.constant 0 : index
      %23 = vector.load %arg2[%c0_20, %c0_21] : memref<8x128xf32, #tpu.memory_space<vmem>>, vector<8x128xf32>
      %24 = arith.addf %22, %23 : vector<8x128xf32>
      %cst_22 = arith.constant dense<0.000000e+00> : vector<8xf32>
      %25 = vector.multi_reduction <add>, %24, %cst_22 [1] : vector<8x128xf32> to vector<8xf32>
      %26 = vector.shape_cast %25 : vector<8xf32> to vector<8x1xf32>
      %cst_23 = arith.constant 3.125000e-02 : f32
      %27 = vector.broadcast %cst_23 : f32 to vector<8x1xf32>
      %28 = arith.mulf %26, %27 : vector<8x1xf32>
      %29 = tpu.iota {dimensions = array<i32: 1>} : vector<8x128xi32>
      %c32_i32 = arith.constant 32 : i32
      %30 = vector.broadcast %c32_i32 : i32 to vector<8x128xi32>
      %31 = arith.cmpi slt, %29, %30 : vector<8x128xi32>
      %32 = vector.broadcast %28 : vector<8x1xf32> to vector<8x128xf32>
      %33 = arith.subf %24, %32 : vector<8x128xf32>
      %cst_24 = arith.constant 0.000000e+00 : f32
      %34 = vector.broadcast %cst_24 : f32 to vector<8x128xf32>
      %35 = arith.select %31, %33, %34 : vector<8x128xi1>, vector<8x128xf32>
      %36 = arith.mulf %35, %35 : vector<8x128xf32>
      %cst_25 = arith.constant dense<0.000000e+00> : vector<8xf32>
      %37 = vector.multi_reduction <add>, %36, %cst_25 [1] : vector<8x128xf32> to vector<8xf32>
      %38 = vector.shape_cast %37 : vector<8xf32> to vector<8x1xf32>
      %cst_26 = arith.constant 3.125000e-02 : f32
      %39 = vector.broadcast %cst_26 : f32 to vector<8x1xf32>
      %40 = arith.mulf %38, %39 : vector<8x1xf32>
      %cst_27 = arith.constant 9.99999997E-7 : f32
      %41 = vector.broadcast %cst_27 : f32 to vector<8x1xf32>
      %42 = arith.addf %40, %41 : vector<8x1xf32>
      %43 = math.rsqrt %42 : vector<8x1xf32>
      %44 = vector.broadcast %43 : vector<8x1xf32> to vector<8x128xf32>
      %45 = arith.mulf %35, %44 : vector<8x128xf32>
      %c0_28 = arith.constant 0 : index
      %c0_29 = arith.constant 0 : index
      %46 = vector.load %arg7[%c0_28, %c0_29] : memref<1x128xf32, #tpu.memory_space<vmem>>, vector<1x128xf32>
      %47 = vector.broadcast %46 : vector<1x128xf32> to vector<8x128xf32>
      %48 = arith.mulf %45, %47 : vector<8x128xf32>
      %c0_30 = arith.constant 0 : index
      %c0_31 = arith.constant 0 : index
      %49 = vector.load %arg8[%c0_30, %c0_31] : memref<1x128xf32, #tpu.memory_space<vmem>>, vector<1x128xf32>
      %50 = vector.broadcast %49 : vector<1x128xf32> to vector<8x128xf32>
      %51 = arith.addf %48, %50 : vector<8x128xf32>
      %c0_32 = arith.constant 0 : index
      %c0_33 = arith.constant 0 : index
      %52 = vector.load %arg9[%c0_32, %c0_33] : memref<8x128xf32, #tpu.memory_space<vmem>>, vector<8x128xf32>
      tpu.vector_store %arg9[%c0_32, %c0_33], %51 {strides = array<i32>} : memref<8x128xf32, #tpu.memory_space<vmem>>, vector<8x128xf32>,
    } else {
    }
    return
  }
  func.func @transform_0(%arg0: i32, %arg1: i32) -> (i32, i32) {
    %c0_i32 = arith.constant 0 : i32
    %c0_i32_0 = arith.constant 0 : i32
    return %arg0, %c0_i32 : i32, i32
  }
  func.func @transform_1(%arg0: i32, %arg1: i32) -> (i32, i32) {
    %c0_i32 = arith.constant 0 : i32
    %c0_i32_0 = arith.constant 0 : i32
    return %c0_i32, %arg1 : i32, i32
  }
  func.func @transform_2(%arg0: i32, %arg1: i32) -> (i32, i32) {
    %c0_i32 = arith.constant 0 : i32
    %c0_i32_0 = arith.constant 0 : i32
    return %c0_i32, %arg1 : i32, i32
  }
  func.func @transform_3(%arg0: i32, %arg1: i32) -> (i32, i32) {
    %c0_i32 = arith.constant 0 : i32
    %c0_i32_0 = arith.constant 0 : i32
    return %arg1, %c0_i32 : i32, i32
  }
  func.func @transform_4(%arg0: i32, %arg1: i32) -> (i32, i32) {
    %c0_i32 = arith.constant 0 : i32
    %c0_i32_0 = arith.constant 0 : i32
    %c0_i32_1 = arith.constant 0 : i32
    return %c0_i32, %c0_i32_0 : i32, i32
  }
  func.func @transform_5(%arg0: i32, %arg1: i32) -> (i32, i32) {
    %c0_i32 = arith.constant 0 : i32
    %c0_i32_0 = arith.constant 0 : i32
    %c0_i32_1 = arith.constant 0 : i32
    return %c0_i32, %c0_i32_0 : i32, i32
  }
  func.func @transform_6(%arg0: i32, %arg1: i32) -> (i32, i32) {
    %c0_i32 = arith.constant 0 : i32
    %c0_i32_0 = arith.constant 0 : i32
    %c0_i32_1 = arith.constant 0 : i32
    return %c0_i32, %c0_i32_0 : i32, i32
  }
  func.func @transform_7(%arg0: i32, %arg1: i32) -> (i32, i32) {
    %c0_i32 = arith.constant 0 : i32
    %c0_i32_0 = arith.constant 0 : i32
    return %arg0, %c0_i32 : i32, i32
  }
}

</mosaic_0001>

<llo_original>
// kernel: tpu_custom_call.1
$region0: #{tpu_custom_call.1}
  #allocation0 [shape = 'u32[]', space=smem, size = 0x4, offset = 0x4, fixed_abs, tag = 'smem constant byte address 0x4 - core index']
  #allocation1 [shape = 'u32[144,128]{1,0:T(1,128)}', space=vmem, size = 0x12000, scoped, tag = 'internal scratch']
  #allocation2 [shape = 'f32[8,128]{1,0:T(8,128)}', space=vmem, size = 0x1000, scoped, tag = 'scratch operand']
  %s0 = inlined_call_operand.hbm [shape: f32[16,128], index: 0, kind: input, shape index: {}]
  %s1 = inlined_call_operand.hbm [shape: f32[128,128], index: 1, kind: input, shape index: {}]
  %s2 = inlined_call_operand.vmem [shape: f32[1,128], index: 2, kind: input, shape index: {}]
  %s3 = inlined_call_operand.hbm [shape: f32[128,128], index: 3, kind: input, shape index: {}]
  %s4 = inlined_call_operand.vmem [shape: f32[1,128], index: 4, kind: input, shape index: {}]
  %s5 = inlined_call_operand.vmem [shape: f32[1,128], index: 5, kind: input, shape index: {}]
  %s6 = inlined_call_operand.vmem [shape: f32[1,128], index: 6, kind: input, shape index: {}]
  %s7 = inlined_call_operand.hbm [shape: f32[16,128], index: 7, kind: output, shape index: {}]
  %s8 = sld [smem:[#allocation0]]
  $region81: #{tpu_custom_call.1} parent=0
    _
  %s10 = ssub.s32 1, %s8
  %s11 = scalar_select 0, %s10, %s8
  $region1: #{tpu_custom_call.1} parent=0
    #allocation3 [shape = 'u8[8192]{0}', space=vmem, size = 0x2000, scoped, tag = 'input window, operand 0']
    #allocation4 [shape = 's32[2]{0}', space=sflag, size = 0x8, scoped, tag = 'scoped memory for tpu_custom_call.1']
    #allocation5 [shape = 's32[2]{0}', space=sflag, size = 0x8, scoped, tag = 'scoped memory for tpu_custom_call.1']
    #allocation6 [shape = 'u8[65536]{0}', space=vmem, size = 0x10000, scoped, tag = 'input window, operand 1, single buffered']
    #allocation7 [shape = 's32[1]{0}', space=sflag, size = 0x4, scoped, tag = 'scoped memory for tpu_custom_call.1']
    #allocation8 [shape = 'u8[65536]{0}', space=vmem, size = 0x10000, scoped, tag = 'input window, operand 3, single buffered']
    #allocation9 [shape = 'u8[8192]{0}', space=vmem, size = 0x2000, scoped, tag = 'output window, operand 0']
    %12 = vsyncpa [#allocation4], 0
    %s13 = scalar_lea.sflag [#allocation4], 1
    %14 = vsyncpa %s13, 0
    %15 = vsyncpa [#allocation7], 0
    %16 = vsyncpa [#allocation5], 0
    %s17 = scalar_lea.sflag [#allocation5], 1
    %18 = vsyncpa %s17, 0
    loop: start=0, step=1, limit=4
    $region2: #{tpu_custom_call.1} parent=1 // loop_pre_header
      _
    $region3: #{tpu_custom_call.1} parent=1 // loop_header
      %s20 = sphi 0, %s24
      %p21 = scmp.ge.s32.totalorder %s20, 4
      %s27 = sphi 0, %s39
      %s28 = sphi 0, %s35
      %s29 = sphi 0, %s27
      %s30 = sphi 0, %s28
      %s31 = sphi 0, %s29
      %s32 = sphi 0, %s30
      %s42 = sphi 0, %s44
      %s45 = sphi 0, %s42
      %s46 = sphi 0, %s45
      %s62 = sphi 0, %s46
      %s68 = sphi 0, %s70
      %s71 = sphi 0, %s68
      %s72 = sphi 0, %s71
      %s88 = sphi 0, %s72
      %s94 = sphi 0, %s96
      %s97 = sphi 0, %s94
      %s98 = sphi 0, %s97
      %s114 = sphi 0, %s98
      %s120 = sphi 0, %s122
      %s123 = sphi 0, %s120
      %s124 = sphi 0, %s123
      %s140 = sphi 0, %s124
      %s144 = sphi 0, %s144
      %s146 = sphi 0, %s144
      %s147 = sphi 0, %s146
      %s161 = sphi 0, %s147
      %s165 = sphi 0, %s165
      %s167 = sphi 0, %s165
      %s168 = sphi 0, %s167
      %s182 = sphi 0, %s168
      %s186 = sphi 0, %s186
      %s188 = sphi 0, %s186
      %s189 = sphi 0, %s188
      %s203 = sphi 0, %s189
      %s209 = sphi 0, %s211
      %s212 = sphi 0, %s209
      %s213 = sphi 0, %s212
      %s229 = sphi 0, %s213
    $region4: #{tpu_custom_call.1} parent=1 // loop_header_branch
      %23 = sbr.rel (%p21) target = $region8
    $region5: #{tpu_custom_call.1} parent=1 // loop_body
      %s25 = ssub.s32 %s20, 1
      %s26 = ssub.s32 %s20, 2
      %s33 = sadd.s32 1, %s28
      %p34 = scmp.ge.s32.totalorder %s33, 1
      %s35 = scalar_select %p34, 0, %s33
      %s36 = sadd.s32 1, %s27
      %s37 = scalar_select %p34, %s36, %s27
      %p38 = scmp.ge.s32.totalorder %s37, 2
      %s39 = scalar_select %p38, 0, %s37
      %s40 = ssub.s32 %s27, %s39
      %p41 = scmp.eq.s32.totalorder %s40, 0
      %s43 = sadd.s32 %s42, 1
      %s44 = scalar_select %p41, %s42, %s43
      %p47 = pneg %p41
      %p48 = scmp.eq.s32.totalorder %s20, 1
      %p49 = por %p47, %p48
      %p50 = scmp.ne.s32.totalorder %s42, %s45
      %p51 = scmp.eq.s32.totalorder %s20, 0
      %p52 = por %p50, %p51
      %p53 = scmp.ne.s32.totalorder %s42, %s45
      %p54 = scmp.eq.s32.totalorder %s25, 1
      %p55 = por %p53, %p54
      %p56 = scmp.ne.s32.totalorder %s45, %s46
      %p57 = scmp.eq.s32.totalorder %s25, 0
      %p58 = por %p56, %p57
      %p59 = scmp.ne.s32.totalorder %s45, %s46
      %p60 = scmp.eq.s32.totalorder %s26, 1
      %p61 = por %p59, %p60
      %p63 = scmp.ne.s32.totalorder %s46, %s62
      %p64 = scmp.eq.s32.totalorder %s26, 0
      %p65 = por %p63, %p64
      %s66 = ssub.s32 %s28, %s35
      %p67 = scmp.eq.s32.totalorder %s66, 0
      %s69 = sadd.s32 %s68, 1
      %s70 = scalar_select %p67, %s68, %s69
      %p73 = pneg %p67
      %p74 = scmp.eq.s32.totalorder %s20, 1
      %p75 = por %p73, %p74
      %p76 = scmp.ne.s32.totalorder %s68, %s71
      %p77 = scmp.eq.s32.totalorder %s20, 0
      %p78 = por %p76, %p77
      %p79 = scmp.ne.s32.totalorder %s68, %s71
      %p80 = scmp.eq.s32.totalorder %s25, 1
      %p81 = por %p79, %p80
      %p82 = scmp.ne.s32.totalorder %s71, %s72
      %p83 = scmp.eq.s32.totalorder %s25, 0
      %p84 = por %p82, %p83
      %p85 = scmp.ne.s32.totalorder %s71, %s72
      %p86 = scmp.eq.s32.totalorder %s26, 1
      %p87 = por %p85, %p86
      %p89 = scmp.ne.s32.totalorder %s72, %s88
      %p90 = scmp.eq.s32.totalorder %s26, 0
      %p91 = por %p89, %p90
      %s92 = ssub.s32 %s28, %s35
      %p93 = scmp.eq.s32.totalorder %s92, 0
      %s95 = sadd.s32 %s94, 1
      %s96 = scalar_select %p93, %s94, %s95
      %p99 = pneg %p93
      %p100 = scmp.eq.s32.totalorder %s20, 1
      %p101 = por %p99, %p100
      %p102 = scmp.ne.s32.totalorder %s94, %s97
      %p103 = scmp.eq.s32.totalorder %s20, 0
      %p104 = por %p102, %p103
      %p105 = scmp.ne.s32.totalorder %s94, %s97
      %p106 = scmp.eq.s32.totalorder %s25, 1
      %p107 = por %p105, %p106
      %p108 = scmp.ne.s32.totalorder %s97, %s98
      %p109 = scmp.eq.s32.totalorder %s25, 0
      %p110 = por %p108, %p109
      %p111 = scmp.ne.s32.totalorder %s97, %s98
      %p112 = scmp.eq.s32.totalorder %s26, 1
      %p113 = por %p111, %p112
      %p115 = scmp.ne.s32.totalorder %s98, %s114
      %p116 = scmp.eq.s32.totalorder %s26, 0
      %p117 = por %p115, %p116
      %s118 = ssub.s32 %s28, %s35
      %p119 = scmp.eq.s32.totalorder %s118, 0
      %s121 = sadd.s32 %s120, 1
      %s122 = scalar_select %p119, %s120, %s121
      %p125 = pneg %p119
      %p126 = scmp.eq.s32.totalorder %s20, 1
      %p127 = por %p125, %p126
      %p128 = scmp.ne.s32.totalorder %s120, %s123
      %p129 = scmp.eq.s32.totalorder %s20, 0
      %p130 = por %p128, %p129
      %p131 = scmp.ne.s32.totalorder %s120, %s123
      %p132 = scmp.eq.s32.totalorder %s25, 1
      %p133 = por %p131, %p132
      %p134 = scmp.ne.s32.totalorder %s123, %s124
      %p135 = scmp.eq.s32.totalorder %s25, 0
      %p136 = por %p134, %p135
      %p137 = scmp.ne.s32.totalorder %s123, %s124
      %p138 = scmp.eq.s32.totalorder %s26, 1
      %p139 = por %p137, %p138
      %p141 = scmp.ne.s32.totalorder %s124, %s140
      %p142 = scmp.eq.s32.totalorder %s26, 0
      %p143 = por %p141, %p142
      %s145 = sadd.s32 %s144, 1
      %p148 = scmp.eq.s32.totalorder %s20, 1
      %p149 = scmp.ne.s32.totalorder %s144, %s146
      %p150 = scmp.eq.s32.totalorder %s20, 0
      %p151 = por %p149, %p150
      %p152 = scmp.ne.s32.totalorder %s144, %s146
      %p153 = scmp.eq.s32.totalorder %s25, 1
      %p154 = por %p152, %p153
      %p155 = scmp.ne.s32.totalorder %s146, %s147
      %p156 = scmp.eq.s32.totalorder %s25, 0
      %p157 = por %p155, %p156
      %p158 = scmp.ne.s32.totalorder %s146, %s147
      %p159 = scmp.eq.s32.totalorder %s26, 1
      %p160 = por %p158, %p159
      %p162 = scmp.ne.s32.totalorder %s147, %s161
      %p163 = scmp.eq.s32.totalorder %s26, 0
      %p164 = por %p162, %p163
      %s166 = sadd.s32 %s165, 1
      %p169 = scmp.eq.s32.totalorder %s20, 1
      %p170 = scmp.ne.s32.totalorder %s165, %s167
      %p171 = scmp.eq.s32.totalorder %s20, 0
      %p172 = por %p170, %p171
      %p173 = scmp.ne.s32.totalorder %s165, %s167
      %p174 = scmp.eq.s32.totalorder %s25, 1
      %p175 = por %p173, %p174
      %p176 = scmp.ne.s32.totalorder %s167, %s168
      %p177 = scmp.eq.s32.totalorder %s25, 0
      %p178 = por %p176, %p177
      %p179 = scmp.ne.s32.totalorder %s167, %s168
      %p180 = scmp.eq.s32.totalorder %s26, 1
      %p181 = por %p179, %p180
      %p183 = scmp.ne.s32.totalorder %s168, %s182
      %p184 = scmp.eq.s32.totalorder %s26, 0
      %p185 = por %p183, %p184
      %s187 = sadd.s32 %s186, 1
      %p190 = scmp.eq.s32.totalorder %s20, 1
      %p191 = scmp.ne.s32.totalorder %s186, %s188
      %p192 = scmp.eq.s32.totalorder %s20, 0
      %p193 = por %p191, %p192
      %p194 = scmp.ne.s32.totalorder %s186, %s188
      %p195 = scmp.eq.s32.totalorder %s25, 1
      %p196 = por %p194, %p195
      %p197 = scmp.ne.s32.totalorder %s188, %s189
      %p198 = scmp.eq.s32.totalorder %s25, 0
      %p199 = por %p197, %p198
      %p200 = scmp.ne.s32.totalorder %s188, %s189
      %p201 = scmp.eq.s32.totalorder %s26, 1
      %p202 = por %p200, %p201
      %p204 = scmp.ne.s32.totalorder %s189, %s203
      %p205 = scmp.eq.s32.totalorder %s26, 0
      %p206 = por %p204, %p205
      %s207 = ssub.s32 %s27, %s39
      %p208 = scmp.eq.s32.totalorder %s207, 0
      %s210 = sadd.s32 %s209, 1
      %s211 = scalar_select %p208, %s209, %s210
      %p214 = pneg %p208
      %p215 = scmp.eq.s32.totalorder %s20, 1
      %p216 = por %p214, %p215
      %p217 = scmp.ne.s32.totalorder %s209, %s212
      %p218 = scmp.eq.s32.totalorder %s20, 0
      %p219 = por %p217, %p218
      %p220 = scmp.ne.s32.totalorder %s209, %s212
      %p221 = scmp.eq.s32.totalorder %s25, 1
      %p222 = por %p220, %p221
      %p223 = scmp.ne.s32.totalorder %s212, %s213
      %p224 = scmp.eq.s32.totalorder %s25, 0
      %p225 = por %p223, %p224
      %p226 = scmp.ne.s32.totalorder %s212, %s213
      %p227 = scmp.eq.s32.totalorder %s26, 1
      %p228 = por %p226, %p227
      %p230 = scmp.ne.s32.totalorder %s213, %s229
      %p231 = scmp.eq.s32.totalorder %s26, 0
      %p232 = por %p230, %p231
      %p233 = scmp.le.s32.totalorder 1, %s20
      %p234 = scmp.lt.s32.totalorder %s20, 3
      %p235 = pnand %p233, %p234
      %p236 = pneg %p235
      // Predicated region
      $region9: #{tpu_custom_call.1} parent=5 // pred_check
        _
      $region10: #{tpu_custom_call.1} parent=5 // pred_check_branch
        %238 = sbr.rel (%p235) target = $region12
      $region11: #{tpu_custom_call.1} parent=5 // pred_region
        %s239 = ssub.s32 %s20, 1
        // Predicated region
        $region13: #{tpu_custom_call.1} parent=11 // pred_check
          %p240 = pneg %p84
        $region14: #{tpu_custom_call.1} parent=11 // pred_check_branch
          %242 = sbr.rel (%p240) target = $region16
        $region15: #{tpu_custom_call.1} parent=11 // pred_region
          %s244 = ssub.s32 2048, 2048
          %245 = vsyncadd [#allocation7], %s244
          %s246 = smul.addr %s30, 128
          %s247 = scalar_lea.hbm %s1, %s246
          %s248 = sshll.u32 [#allocation6], 4
          %s249 = int_to_ptr.vmem [resolvable:$true] %s248
          %254 = dma.hbm_to_vmem [thread:$0]  %s247, 2048, %s249, [#allocation7], 128, 128, 8
        $region16: #{tpu_custom_call.1} parent=11 // pred_fallthru
          _
        // Predicated region
        $region17: #{tpu_custom_call.1} parent=11 // pred_check
          %p255 = pneg %p110
        $region18: #{tpu_custom_call.1} parent=11 // pred_check_branch
          %257 = sbr.rel (%p255) target = $region20
        $region19: #{tpu_custom_call.1} parent=11 // pred_region
          %p258 = scmp.lt.s32.totalorder %s30, 0
          %s259 = scalar_select %p258, %s30, 0
          %s260 = scalar_lea.vmem %s2, %s259
        $region20: #{tpu_custom_call.1} parent=11 // pred_fallthru
          _
        // Predicated region
        $region21: #{tpu_custom_call.1} parent=11 // pred_check
          %p261 = pneg %p136
        $region22: #{tpu_custom_call.1} parent=11 // pred_check_branch
          %263 = sbr.rel (%p261) target = $region24
        $region23: #{tpu_custom_call.1} parent=11 // pred_region
          %s264 = smul.u32 16, %s30
          %s266 = ssub.s32 2048, 2048
          %267 = vsyncadd [#allocation7], %s266
          %s268 = smul.addr %s264, 128
          %s269 = scalar_lea.hbm %s3, %s268
          %s270 = sshll.u32 [#allocation8], 4
          %s271 = int_to_ptr.vmem [resolvable:$true] %s270
          %276 = dma.hbm_to_vmem [thread:$0]  %s269, 2048, %s271, [#allocation7], 128, 128, 8
        $region24: #{tpu_custom_call.1} parent=11 // pred_fallthru
          _
        // Predicated region
        $region25: #{tpu_custom_call.1} parent=11 // pred_check
          %p277 = pneg %p157
        $region26: #{tpu_custom_call.1} parent=11 // pred_check_branch
          %279 = sbr.rel (%p277) target = $region28
        $region27: #{tpu_custom_call.1} parent=11 // pred_region
          _
        $region28: #{tpu_custom_call.1} parent=11 // pred_fallthru
          _
        // Predicated region
        $region29: #{tpu_custom_call.1} parent=11 // pred_check
          %p280 = pneg %p178
        $region30: #{tpu_custom_call.1} parent=11 // pred_check_branch
          %282 = sbr.rel (%p280) target = $region32
        $region31: #{tpu_custom_call.1} parent=11 // pred_region
          _
        $region32: #{tpu_custom_call.1} parent=11 // pred_fallthru
          _
        // Predicated region
        $region33: #{tpu_custom_call.1} parent=11 // pred_check
          %p283 = pneg %p199
        $region34: #{tpu_custom_call.1} parent=11 // pred_check_branch
          %285 = sbr.rel (%p283) target = $region36
        $region35: #{tpu_custom_call.1} parent=11 // pred_region
          _
        $region36: #{tpu_custom_call.1} parent=11 // pred_fallthru
          _
      $region12: #{tpu_custom_call.1} parent=5 // pred_fallthru
        _
      %p286 = scmp.lt.s32.totalorder %s20, 2
      // Predicated region
      $region37: #{tpu_custom_call.1} parent=5 // pred_check
        %p287 = pneg %p286
      $region38: #{tpu_custom_call.1} parent=5 // pred_check_branch
        %289 = sbr.rel (%p287) target = $region40
      $region39: #{tpu_custom_call.1} parent=5 // pred_region
        // Predicated region
        $region41: #{tpu_custom_call.1} parent=39 // pred_check
          %p290 = pneg %p52
        $region42: #{tpu_custom_call.1} parent=39 // pred_check_branch
          %292 = sbr.rel (%p290) target = $region44
        $region43: #{tpu_custom_call.1} parent=39 // pred_region
          %s293 = sand.u32 %s42, 1
          %s294 = scalar_lea.sflag [#allocation4], %s293
          %s295 = sand.u32 %s42, 1
          %s296 = smul.addr %s295, 8
          %s297 = scalar_lea.vmem [#allocation3], %s296
          %s299 = ssub.s32 128, 128
          %300 = vsyncadd %s294, %s299
          %s301 = smul.addr %s27, 128
          %s302 = scalar_lea.hbm %s0, %s301
          %s304 = sshll.u32 %s297, 4
          %s305 = int_to_ptr.vmem [resolvable:$true] %s304
          %307 = dma.hbm_to_vmem [thread:$0]  %s302, 128, %s305, %s294
        $region44: #{tpu_custom_call.1} parent=39 // pred_fallthru
          _
      $region40: #{tpu_custom_call.1} parent=5 // pred_fallthru
        _
      %p308 = scmp.le.s32.totalorder 1, %s20
      %p309 = scmp.lt.s32.totalorder %s20, 3
      %p310 = pnand %p308, %p309
      %p311 = pneg %p310
      // Predicated region
      $region45: #{tpu_custom_call.1} parent=5 // pred_check
        _
      $region46: #{tpu_custom_call.1} parent=5 // pred_check_branch
        %313 = sbr.rel (%p310) target = $region48
      $region47: #{tpu_custom_call.1} parent=5 // pred_region
        %s314 = ssub.s32 %s20, 1
        %s315 = sand.u32 %s45, 1
        %s316 = scalar_lea.sflag [#allocation4], %s315
        %s317 = sand.u32 %s45, 1
        %s318 = smul.addr %s317, 8
        %s319 = scalar_lea.vmem [#allocation3], %s318
        // Predicated region
        $region49: #{tpu_custom_call.1} parent=47 // pred_check
          %p320 = pneg %p58
        $region50: #{tpu_custom_call.1} parent=47 // pred_check_branch
          %322 = sbr.rel (%p320) target = $region52
        $region51: #{tpu_custom_call.1} parent=47 // pred_region
          %323 = dma.done %s316, 128
        $region52: #{tpu_custom_call.1} parent=47 // pred_fallthru
          _
        // Predicated region
        $region53: #{tpu_custom_call.1} parent=47 // pred_check
          %p324 = pneg %p84
        $region54: #{tpu_custom_call.1} parent=47 // pred_check_branch
          %326 = sbr.rel (%p324) target = $region56
        $region55: #{tpu_custom_call.1} parent=47 // pred_region
          %327 = dma.done [#allocation7], 2048
        $region56: #{tpu_custom_call.1} parent=47 // pred_fallthru
          _
        // Predicated region
        $region57: #{tpu_custom_call.1} parent=47 // pred_check
          %p328 = pneg %p136
        $region58: #{tpu_custom_call.1} parent=47 // pred_check_branch
          %330 = sbr.rel (%p328) target = $region60
        $region59: #{tpu_custom_call.1} parent=47 // pred_region
          %331 = dma.done [#allocation7], 2048
        $region60: #{tpu_custom_call.1} parent=47 // pred_fallthru
          _
        %s332 = sand.u32 %s45, 1
        %s333 = scalar_lea.sflag [#allocation4], %s332
        %s334 = sand.u32 %s45, 1
        %s335 = smul.addr %s334, 8
        %s336 = scalar_lea.vmem [#allocation3], %s335
        %p337 = pneg %p58
        %p338 = pneg %p55
        %p339 = pneg %p84
        %p340 = pneg %p81
        %p341 = scmp.lt.s32.totalorder %s30, 0
        %s342 = scalar_select %p341, %s30, 0
        %s343 = scalar_lea.vmem %s2, %s342
        %p344 = pneg %p110
        %p345 = pneg %p107
        %p346 = pneg %p136
        %p347 = pneg %p133
        %p348 = pneg %p157
        %p349 = pneg %p154
        %p350 = pneg %p178
        %p351 = pneg %p175
        %p352 = pneg %p199
        %p353 = pneg %p196
        %p354 = pneg %p225
        %p355 = pneg %p222
        %s356 = sand.u32 %s212, 1
        %s357 = scalar_lea.sflag [#allocation5], %s356
        %s358 = sand.u32 %s212, 1
        %s359 = smul.addr %s358, 8
        %s360 = scalar_lea.vmem [#allocation9], %s359
        %p361 = scmp.lt.s32.totalorder %s30, 0
        %s362 = scalar_select %p361, %s30, 0
        %s363 = scalar_lea.vmem %s2, %s362
        %s364 = smul.u32 16, %s30
        %p365 = scmp.eq.s32.totalorder %s30, 0
        // Predicated region
        $region61: #{tpu_custom_call.1} parent=47 // pred_check
          %p366 = pneg %p365
        $region62: #{tpu_custom_call.1} parent=47 // pred_check_branch
          %368 = sbr.rel (%p366) target = $region64
        $region63: #{tpu_custom_call.1} parent=47 // pred_region
          %369 = vst [vmem:[#allocation2] sm:$0xff] 0.0
        $region64: #{tpu_custom_call.1} parent=47 // pred_fallthru
          _
        %v370 = vld [vmem:[%s319] sm:$0xff]
        %v371 = vld [vmem:[#allocation6] sm:$0xff]
        %v372 = vld [vmem:[#allocation6 + $0x8] sm:$0xff]
        %v373 = vld [vmem:[#allocation6 + $0x10] sm:$0xff]
        %v374 = vld [vmem:[#allocation6 + $0x18] sm:$0xff]
        %v375 = vld [vmem:[#allocation6 + $0x20] sm:$0xff]
        %v376 = vld [vmem:[#allocation6 + $0x28] sm:$0xff]
        %v377 = vld [vmem:[#allocation6 + $0x30] sm:$0xff]
        %v378 = vld [vmem:[#allocation6 + $0x38] sm:$0xff]
        %v379 = vld [vmem:[#allocation6 + $0x40] sm:$0xff]
        %v380 = vld [vmem:[#allocation6 + $0x48] sm:$0xff]
        %v381 = vld [vmem:[#allocation6 + $0x50] sm:$0xff]
        %v382 = vld [vmem:[#allocation6 + $0x58] sm:$0xff]
        %v383 = vld [vmem:[#allocation6 + $0x60] sm:$0xff]
        %v384 = vld [vmem:[#allocation6 + $0x68] sm:$0xff]
        %v385 = vld [vmem:[#allocation6 + $0x70] sm:$0xff]
        %v386 = vld [vmem:[#allocation6 + $0x78] sm:$0xff]
        %v387 = vld [vmem:[%s363] sm:$0x1]
        %v389 = vlaneseq
        %v390 = vshrl.u32 %v389, 7
        %v391 = vsub.s32 0, %v390
        %v392 = vrot.slane %v387, %v391
        %394 = vmatprep.subr.mxu0 0.0
        %395 = vmatpush1.msra.mxu0 %v386
        %396 = vmatprep.subr.mxu0 0.0
        %397 = vmatpush1.msra.mxu0 %v385
        %398 = vmatprep.subr.mxu0 0.0
        %399 = vmatpush1.msra.mxu0 %v384
        %400 = vmatprep.subr.mxu0 0.0
        %401 = vmatpush1.msra.mxu0 %v383
        %402 = vmatprep.subr.mxu0 0.0
        %403 = vmatpush1.msra.mxu0 %v382
        %404 = vmatprep.subr.mxu0 0.0
        %405 = vmatpush1.msra.mxu0 %v381
        %406 = vmatprep.subr.mxu0 0.0
        %407 = vmatpush1.msra.mxu0 %v380
        %408 = vmatprep.subr.mxu0 0.0
        %409 = vmatpush1.msra.mxu0 %v379
        %410 = vmatprep.subr.mxu0 0.0
        %411 = vmatpush1.msra.mxu0 %v378
        %412 = vmatprep.subr.mxu0 0.0
        %413 = vmatpush1.msra.mxu0 %v377
        %414 = vmatprep.subr.mxu0 0.0
        %415 = vmatpush1.msra.mxu0 %v376
        %416 = vmatprep.subr.mxu0 0.0
        %417 = vmatpush1.msra.mxu0 %v375
        %418 = vmatprep.subr.mxu0 0.0
        %419 = vmatpush1.msra.mxu0 %v374
        %420 = vmatprep.subr.mxu0 0.0
        %421 = vmatpush1.msra.mxu0 %v373
        %422 = vmatprep.subr.mxu0 0.0
        %423 = vmatpush1.msra.mxu0 %v372
        %424 = vmatprep.subr.mxu0 0.0
        %425 = vmatpush1.msra.mxu0 %v371
        %426 = vmatprep.subr.mxu0 0.0
        %427 = vmatpush2.msra.mxu0 0.0
        %428 = vmatprep.subr.mxu0 0.0
        %429 = vmatpush2.msra.mxu0 0.0
        %430 = vmatprep.subr.mxu0 0.0
        %431 = vmatpush2.msra.mxu0 0.0
        %432 = vmatprep.subr.mxu0 0.0
        %433 = vmatpush2.msra.mxu0 0.0
        %434 = vmatprep.subr.mxu0 0.0
        %435 = vmatpush2.msra.mxu0 0.0
        %436 = vmatprep.subr.mxu0 0.0
        %437 = vmatpush2.msra.mxu0 0.0
        %438 = vmatprep.subr.mxu0 0.0
        %439 = vmatpush2.msra.mxu0 0.0
        %440 = vmatprep.subr.mxu0 0.0
        %441 = vmatpush2.msra.mxu0 0.0
        %442 = vmatprep.subr.mxu0 0.0
        %443 = vmatpush2.msra.mxu0 0.0
        %444 = vmatprep.subr.mxu0 0.0
        %445 = vmatpush2.msra.mxu0 0.0
        %446 = vmatprep.subr.mxu0 0.0
        %447 = vmatpush2.msra.mxu0 0.0
        %448 = vmatprep.subr.mxu0 0.0
        %449 = vmatpush2.msra.mxu0 0.0
        %450 = vmatprep.subr.mxu0 0.0
        %451 = vmatpush2.msra.mxu0 0.0
        %452 = vmatprep.subr.mxu0 0.0
        %453 = vmatpush2.msra.mxu0 0.0
        %454 = vmatprep.subr.mxu0 0.0
        %455 = vmatpush2.msra.mxu0 0.0
        %456 = vmatprep.subr.mxu0 0.0
        %457 = vmatpush2.msra.mxu0 0.0
        %458 = vmatprep.mubr.f32.mxu0 0.0
        %459 = vmatmul.mubr.f32.gmra.mxu0 %v370
        %v460 = vpop.f32.mrf.mxu0
        %v461 = vadd.f32 %v392, %v460
        %v462 = vpop.f32.mrf.mxu0
        %463 = vdwg.mxu0
        %v464 = vmax.f32 %v461, 0.0
        %v465 = vld [vmem:[#allocation2] sm:$0xff]
        %v466 = vld [vmem:[#allocation8] sm:$0xff]
        %v467 = vld [vmem:[#allocation8 + $0x8] sm:$0xff]
        %v468 = vld [vmem:[#allocation8 + $0x10] sm:$0xff]
        %v469 = vld [vmem:[#allocation8 + $0x18] sm:$0xff]
        %v470 = vld [vmem:[#allocation8 + $0x20] sm:$0xff]
        %v471 = vld [vmem:[#allocation8 + $0x28] sm:$0xff]
        %v472 = vld [vmem:[#allocation8 + $0x30] sm:$0xff]
        %v473 = vld [vmem:[#allocation8 + $0x38] sm:$0xff]
        %v474 = vld [vmem:[#allocation8 + $0x40] sm:$0xff]
        %v475 = vld [vmem:[#allocation8 + $0x48] sm:$0xff]
        %v476 = vld [vmem:[#allocation8 + $0x50] sm:$0xff]
        %v477 = vld [vmem:[#allocation8 + $0x58] sm:$0xff]
        %v478 = vld [vmem:[#allocation8 + $0x60] sm:$0xff]
        %v479 = vld [vmem:[#allocation8 + $0x68] sm:$0xff]
        %v480 = vld [vmem:[#allocation8 + $0x70] sm:$0xff]
        %v481 = vld [vmem:[#allocation8 + $0x78] sm:$0xff]
        %482 = vmatprep.subr.mxu0 0.0
        %483 = vmatpush1.msra.mxu0 %v481
        %484 = vmatprep.subr.mxu0 0.0
        %485 = vmatpush1.msra.mxu0 %v480
        %486 = vmatprep.subr.mxu0 0.0
        %487 = vmatpush1.msra.mxu0 %v479
        %488 = vmatprep.subr.mxu0 0.0
        %489 = vmatpush1.msra.mxu0 %v478
        %490 = vmatprep.subr.mxu0 0.0
        %491 = vmatpush1.msra.mxu0 %v477
        %492 = vmatprep.subr.mxu0 0.0
        %493 = vmatpush1.msra.mxu0 %v476
        %494 = vmatprep.subr.mxu0 0.0
        %495 = vmatpush1.msra.mxu0 %v475
        %496 = vmatprep.subr.mxu0 0.0
        %497 = vmatpush1.msra.mxu0 %v474
        %498 = vmatprep.subr.mxu0 0.0
        %499 = vmatpush1.msra.mxu0 %v473
        %500 = vmatprep.subr.mxu0 0.0
        %501 = vmatpush1.msra.mxu0 %v472
        %502 = vmatprep.subr.mxu0 0.0
        %503 = vmatpush1.msra.mxu0 %v471
        %504 = vmatprep.subr.mxu0 0.0
        %505 = vmatpush1.msra.mxu0 %v470
        %506 = vmatprep.subr.mxu0 0.0
        %507 = vmatpush1.msra.mxu0 %v469
        %508 = vmatprep.subr.mxu0 0.0
        %509 = vmatpush1.msra.mxu0 %v468
        %510 = vmatprep.subr.mxu0 0.0
        %511 = vmatpush1.msra.mxu0 %v467
        %512 = vmatprep.subr.mxu0 0.0
        %513 = vmatpush1.msra.mxu0 %v466
        %514 = vmatprep.subr.mxu0 0.0
        %515 = vmatpush2.msra.mxu0 0.0
        %516 = vmatprep.subr.mxu0 0.0
        %517 = vmatpush2.msra.mxu0 0.0
        %518 = vmatprep.subr.mxu0 0.0
        %519 = vmatpush2.msra.mxu0 0.0
        %520 = vmatprep.subr.mxu0 0.0
        %521 = vmatpush2.msra.mxu0 0.0
        %522 = vmatprep.subr.mxu0 0.0
        %523 = vmatpush2.msra.mxu0 0.0
        %524 = vmatprep.subr.mxu0 0.0
        %525 = vmatpush2.msra.mxu0 0.0
        %526 = vmatprep.subr.mxu0 0.0
        %527 = vmatpush2.msra.mxu0 0.0
        %528 = vmatprep.subr.mxu0 0.0
        %529 = vmatpush2.msra.mxu0 0.0
        %530 = vmatprep.subr.mxu0 0.0
        %531 = vmatpush2.msra.mxu0 0.0
        %532 = vmatprep.subr.mxu0 0.0
        %533 = vmatpush2.msra.mxu0 0.0
        %534 = vmatprep.subr.mxu0 0.0
        %535 = vmatpush2.msra.mxu0 0.0
        %536 = vmatprep.subr.mxu0 0.0
        %537 = vmatpush2.msra.mxu0 0.0
        %538 = vmatprep.subr.mxu0 0.0
        %539 = vmatpush2.msra.mxu0 0.0
        %540 = vmatprep.subr.mxu0 0.0
        %541 = vmatpush2.msra.mxu0 0.0
        %542 = vmatprep.subr.mxu0 0.0
        %543 = vmatpush2.msra.mxu0 0.0
        %544 = vmatprep.subr.mxu0 0.0
        %545 = vmatpush2.msra.mxu0 0.0
        %546 = vmatprep.mubr.f32.mxu0 0.0
        %547 = vmatmul.mubr.f32.gmra.mxu0 %v464
        %v548 = vpop.f32.mrf.mxu0
        %v549 = vadd.f32 0.0, %v548
        %v550 = vpop.f32.mrf.mxu0
        %551 = vdwg.mxu0
        %v552 = vadd.f32 %v465, %v549
        %553 = vst [vmem:[#allocation2] sm:$0xff] %v552
        // Predicated region
        $region65: #{tpu_custom_call.1} parent=47 // pred_check
          %p554 = pneg %p365
        $region66: #{tpu_custom_call.1} parent=47 // pred_check_branch
          %556 = sbr.rel (%p554) target = $region68
        $region67: #{tpu_custom_call.1} parent=47 // pred_region
          %v557 = vld [vmem:[#allocation2] sm:$0xff]
          %v558 = vld [vmem:[%s4] sm:$0x1]
          %v560 = vlaneseq
          %v561 = vshrl.u32 %v560, 7
          %v562 = vsub.s32 0, %v561
          %v563 = vrot.slane %v558, %v562
          %v565 = vadd.f32 %v557, %v563
          %v566 = vld [vmem:[%s319] sm:$0xff]
          %v567 = vadd.f32 %v565, %v566
          %568 = vadd.xlane.f32.xlu0 %v567
          %v569 = vpop.xlane.xlu0 %568
          %v570 = vmul.f32 %v569, 0.03125
          %v571 = vlaneseq
          %v572 = vand.u32 %v571, 127
          %vm573 = vcmp.lt.s32.totalorder %v572, 32
          %v574 = vsub.f32 %v567, %v570
          %v575 = vsel %vm573, %v574, 0.0
          %v576 = vmul.f32 %v575, %v575
          %577 = vadd.xlane.f32.xlu0 %v576
          %v578 = vpop.xlane.xlu0 %577
          %v579 = vmul.f32 %v578, 0.03125
          %v580 = vadd.f32 %v579, 1e-06
          %v581 = vrsqrt.pop %v580
          %v582 = vmul.f32 %v575, %v581
          %v583 = vld [vmem:[%s5] sm:$0x1]
          %v585 = vlaneseq
          %v586 = vshrl.u32 %v585, 7
          %v587 = vsub.s32 0, %v586
          %v588 = vrot.slane %v583, %v587
          %v590 = vmul.f32 %v582, %v588
          %v591 = vld [vmem:[%s6] sm:$0x1]
          %v593 = vlaneseq
          %v594 = vshrl.u32 %v593, 7
          %v595 = vsub.s32 0, %v594
          %v596 = vrot.slane %v591, %v595
          %v598 = vadd.f32 %v590, %v596
          %599 = vst [vmem:[%s360] sm:$0xff] %v598
        $region68: #{tpu_custom_call.1} parent=47 // pred_fallthru
          _
        %s600 = sand.u32 %s212, 1
        %s601 = scalar_lea.sflag [#allocation5], %s600
        %s602 = sand.u32 %s212, 1
        %s603 = smul.addr %s602, 8
        %s604 = scalar_lea.vmem [#allocation9], %s603
        // Predicated region
        $region69: #{tpu_custom_call.1} parent=47 // pred_check
          %p605 = pneg %p222
        $region70: #{tpu_custom_call.1} parent=47 // pred_check_branch
          %607 = sbr.rel (%p605) target = $region72
        $region71: #{tpu_custom_call.1} parent=47 // pred_region
          %s609 = ssub.s32 128, 128
          %610 = vsyncadd %s601, %s609
          %s611 = smul.addr %s29, 128
          %s612 = scalar_lea.hbm %s7, %s611
          %s614 = sshll.u32 %s604, 4
          %s615 = int_to_ptr.vmem [resolvable:$true] %s614
          %617 = dma.vmem_to_hbm [thread:$0]  %s615, 128, %s612, %s601
        $region72: #{tpu_custom_call.1} parent=47 // pred_fallthru
          _
      $region48: #{tpu_custom_call.1} parent=5 // pred_fallthru
        _
      %p618 = scmp.le.s32.totalorder 2, %s20
      // Predicated region
      $region73: #{tpu_custom_call.1} parent=5 // pred_check
        %p619 = pneg %p618
      $region74: #{tpu_custom_call.1} parent=5 // pred_check_branch
        %621 = sbr.rel (%p619) target = $region76
      $region75: #{tpu_custom_call.1} parent=5 // pred_region
        %s622 = ssub.s32 %s20, 2
        // Predicated region
        $region77: #{tpu_custom_call.1} parent=75 // pred_check
          %p623 = pneg %p228
        $region78: #{tpu_custom_call.1} parent=75 // pred_check_branch
          %625 = sbr.rel (%p623) target = $region80
        $region79: #{tpu_custom_call.1} parent=75 // pred_region
          %s626 = sand.u32 %s213, 1
          %s627 = scalar_lea.sflag [#allocation5], %s626
          %s628 = sand.u32 %s213, 1
          %s629 = smul.addr %s628, 8
          %s630 = scalar_lea.vmem [#allocation9], %s629
          %631 = dma.done %s627, 128
        $region80: #{tpu_custom_call.1} parent=75 // pred_fallthru
          _
      $region76: #{tpu_custom_call.1} parent=5 // pred_fallthru
        _
    $region6: #{tpu_custom_call.1} parent=1 // loop_footer
      %s24 = sadd.s32 1, %s20
    $region7: #{tpu_custom_call.1} parent=1 // loop_footer_branch
      %19 = sbr.rel target = $region3
    $region8: #{tpu_custom_call.1} parent=1 // loop_exit
      _
    %632 = vsyncpa [#allocation4], 1
    %s633 = scalar_lea.sflag [#allocation4], 1
    %634 = vsyncpa %s633, 1
    %635 = vsyncpa [#allocation7], 1
    %636 = vsyncpa [#allocation5], 1
    %s637 = scalar_lea.sflag [#allocation5], 1
    %638 = vsyncpa %s637, 1

</llo_original>
